<compile_context>
chip_gen: v7x
topology: tpu7x:2x2x1
jax: 0.10.0
libtpu: 0.0.40
codegen_flags: <defaults>
</compile_context>

<pallas_src>
import functools

import jax
import jax.numpy as jnp
from jax import lax
from jax.experimental import pallas as pl
from jax.experimental.pallas import tpu as pltpu


# --------------------------------------------------------------------------------------
# Kernels
# --------------------------------------------------------------------------------------
def _conv_stats_kernel(p_ref, w_ref, conv_ref, stats_ref):
    """Per M-tile: conv = patches @ weight (bf16 in, f32 acc) + per-tile sum / sumsq."""
    acc = jnp.dot(p_ref[...], w_ref[...], preferred_element_type=jnp.float32)  # (TM, C_pad) f32
    conv_ref[...] = acc
    s = jnp.sum(acc, axis=0, keepdims=True)          # (1, C_pad)
    ss = jnp.sum(acc * acc, axis=0, keepdims=True)   # (1, C_pad)
    stats_ref[...] = jnp.concatenate([s, ss], axis=0).reshape(1, 2, acc.shape[1])


def _bn_relu_kernel(conv_ref, scale_ref, shift_ref, out_ref):
    """Per M-tile: y = relu(conv * scale + shift) with folded BN scale/shift."""
    y = conv_ref[...] * scale_ref[...] + shift_ref[...]
    out_ref[...] = jnp.maximum(y, 0.0)


# --------------------------------------------------------------------------------------
# Wrapper (NCHW in / NCHW out, matching the PyTorch module)
# --------------------------------------------------------------------------------------
def _round_up(x, m):
    return (x + m - 1) // m * m


def _im2col_nhwc(x_nhwc, kH, kW, stride, pad):
    """(N,H,W,C_in) -> ((N*H_out*W_out, kH*kW*C_in), (H_out, W_out)). Column order = (kh, kw, c_in)."""
    N, H, W, C_in = x_nhwc.shape
    s = stride
    H_out = (H + 2 * pad - kH) // s + 1
    W_out = (W + 2 * pad - kW) // s + 1
    xp = jnp.pad(x_nhwc, ((0, 0), (pad, pad), (pad, pad), (0, 0)))
    cols = []
    for kh in range(kH):
        for kw in range(kW):
            sl = xp[:, kh:kh + s * (H_out - 1) + 1:s, kw:kw + s * (W_out - 1) + 1:s, :]
            cols.append(sl)                                   # (N, H_out, W_out, C_in)
    pm = jnp.concatenate(cols, axis=-1)                       # (N, H_out, W_out, kH*kW*C_in)
    return pm.reshape(N * H_out * W_out, kH * kW * C_in), (H_out, W_out)


@functools.partial(jax.jit, static_argnames=("stride", "eps", "block_m"))
def conv_block_forward(x_nchw, weight_oihw, bias, gamma, beta, *, stride, eps=1e-5, block_m=256):
    """Forward of ConvBlock. x_nchw: (N, C_in, H, W) float32. Returns NCHW float32."""
    del bias  # per-channel conv bias is exactly cancelled by train-mode BN mean subtraction

    N, C_in, H, W = x_nchw.shape
    C_out, C_in_w, kH, kW = weight_oihw.shape
    assert C_in == C_in_w and kH == kW and kH % 2 == 1
    pad = (kH - 1) // 2
    s = stride

    # ---- glue: NCHW -> NHWC, im2col ----
    x_nhwc = jnp.transpose(x_nchw, (0, 2, 3, 1)).astype(jnp.float32)
    patches, (H_out, W_out) = _im2col_nhwc(x_nhwc, kH, kW, s, pad)
    M, K = patches.shape

    # ---- lane-dense padding: K/C_out -> multiples of 128, M -> multiple of the M tile ----
    C_pad = _round_up(C_out, 128)
    K_pad = _round_up(K, 128)
    TM = min(_round_up(block_m, 8), _round_up(M, 8))
    M_pad = _round_up(M, TM)
    n_tiles = M_pad // TM

    patches_p = jnp.pad(patches, ((0, M_pad - M), (0, K_pad - K))).astype(jnp.bfloat16)
    w_kc = jnp.transpose(weight_oihw, (2, 3, 1, 0)).reshape(K, C_out).astype(jnp.float32)
    w_p = jnp.pad(w_kc, ((0, K_pad - K), (0, C_pad - C_out))).astype(jnp.bfloat16)

    vmem_limit = 32 * 1024 * 1024  # explicit budget; safe on v5e/v6e/v7x

    # ---- pass 1: tiled conv matmul + per-tile partial BN statistics ----
    cost1 = pl.CostEstimate(
        flops=2 * M_pad * K_pad * C_pad + 4 * M_pad * C_pad,
        transcendentals=0,
        bytes_accessed=(M_pad * K_pad + K_pad * C_pad) * 2
        + (M_pad + 2 * n_tiles) * C_pad * 4,
    )
    conv_f32, partial_stats = pl.pallas_call(
        _conv_stats_kernel,
        out_shape=(
            jax.ShapeDtypeStruct((M_pad, C_pad), jnp.float32),
            jax.ShapeDtypeStruct((n_tiles, 2, C_pad), jnp.float32),
        ),
        grid=(n_tiles,),
        in_specs=[
            pl.BlockSpec((TM, K_pad), lambda i: (i, 0)),
            pl.BlockSpec((K_pad, C_pad), lambda i: (0, 0)),
        ],
        out_specs=(
            pl.BlockSpec((TM, C_pad), lambda i: (i, 0)),
            pl.BlockSpec((1, 2, C_pad), lambda i: (i, 0, 0)),
        ),
        compiler_params=pltpu.CompilerParams(
            dimension_semantics=("parallel",), vmem_limit_bytes=vmem_limit),
        cost_estimate=cost1,
    )(patches_p, w_p)

    # ---- global train-mode BN stats from per-tile partials (tiny, plain JAX) ----
    sums = jnp.sum(partial_stats, axis=0)                    # (2, C_pad)
    mean = sums[0] / M
    var = jnp.maximum(sums[1] / M - mean * mean, 0.0)        # biased variance, one-pass form
    inv_std = lax.rsqrt(var + eps)
    gamma_p = jnp.pad(gamma.astype(jnp.float32), (0, C_pad - C_out))
    beta_p = jnp.pad(beta.astype(jnp.float32), (0, C_pad - C_out))
    scale = (gamma_p * inv_std).reshape(1, C_pad)
    shift = (beta_p - mean * gamma_p * inv_std).reshape(1, C_pad)

    # ---- pass 2: tiled, lane-dense BN apply + ReLU ----
    cost2 = pl.CostEstimate(
        flops=3 * M_pad * C_pad,
        transcendentals=0,
        bytes_accessed=2 * M_pad * C_pad * 4 + 2 * C_pad * 4,
    )
    y = pl.pallas_call(
        _bn_relu_kernel,
        out_shape=jax.ShapeDtypeStruct((M_pad, C_pad), jnp.float32),
        grid=(n_tiles,),
        in_specs=[
            pl.BlockSpec((TM, C_pad), lambda i: (i, 0)),
            pl.BlockSpec((1, C_pad), lambda i: (0, 0)),
            pl.BlockSpec((1, C_pad), lambda i: (0, 0)),
        ],
        out_specs=pl.BlockSpec((TM, C_pad), lambda i: (i, 0)),
        compiler_params=pltpu.CompilerParams(
            dimension_semantics=("parallel",), vmem_limit_bytes=vmem_limit),
        cost_estimate=cost2,
    )(conv_f32, scale, shift)

    # ---- slice off padding, back to NCHW ----
    out_nhwc = y[:M, :C_out].reshape(N, H_out, W_out, C_out)
    return jnp.transpose(out_nhwc, (0, 3, 1, 2))


# --------------------------------------------------------------------------------------
# References
# --------------------------------------------------------------------------------------
def conv_block_reference(x_nchw, weight_oihw, bias, gamma, beta, *, stride, eps=1e-5):
    """Pure-JAX f32 reference matching PyTorch ConvBlock.forward (BN in train mode)."""
    x = jnp.transpose(x_nchw, (0, 2, 3, 1))
    w = jnp.transpose(weight_oihw, (2, 3, 1, 0))
    p = (w.shape[0] - 1) // 2
    y = lax.conv_general_dilated(x, w, (stride, stride), [(p, p), (p, p)],
                                 dimension_numbers=("NHWC", "HWIO", "NHWC"))
    y = y + bias
    mean = jnp.mean(y, axis=(0, 1, 2), keepdims=True)
    var = jnp.mean((y - mean) ** 2, axis=(0, 1, 2), keepdims=True)
    y = (y - mean) * lax.rsqrt(var + eps)
    y = y * gamma + beta
    y = jnp.maximum(y, 0.0)
    return jnp.transpose(y, (0, 3, 1, 2))


def conv_block_reference_quantized(x_nchw, weight_oihw, bias, gamma, beta, *, stride, eps=1e-5):
    """Plain-JAX replica of the kernel's math (im2col + bf16 matmul, f32 BN) for a tight check."""
    N, C_in, H, W = x_nchw.shape
    C_out, _, kH, kW = weight_oihw.shape
    pad = (kH - 1) // 2
    x_nhwc = jnp.transpose(x_nchw, (0, 2, 3, 1)).astype(jnp.float32)
    patches, (H_out, W_out) = _im2col_nhwc(x_nhwc, kH, kW, stride, pad)
    w_kc = jnp.transpose(weight_oihw, (2, 3, 1, 0)).reshape(kH * kW * C_in, C_out)
    y = jnp.dot(patches.astype(jnp.bfloat16), w_kc.astype(jnp.bfloat16),
                preferred_element_type=jnp.float32)
    y = y + bias
    mean = jnp.mean(y, axis=0, keepdims=True)
    var = jnp.mean((y - mean) ** 2, axis=0, keepdims=True)
    y = (y - mean) * lax.rsqrt(var + eps)
    y = y * gamma + beta
    y = jnp.maximum(y, 0.0)
    return jnp.transpose(y.reshape(N, H_out, W_out, C_out), (0, 3, 1, 2))


# --------------------------------------------------------------------------------------
# Self-test
# --------------------------------------------------------------------------------------
if __name__ == "__main__":
    # ConvBlock(in_channels=4, out_channels=8, kernel=3, stride=2)
    N, C_in, H, W = 2, 4, 16, 16
    C_out, k, stride = 8, 3, 2

    key = jax.random.PRNGKey(0)
    kx, kw, kb, kg, kbe = jax.random.split(key, 5)

    x = jax.random.normal(kx, (N, C_in, H, W), jnp.float32)
    bound = 1.0 / (C_in * k * k) ** 0.5
    conv_w = jax.random.uniform(kw, (C_out, C_in, k, k), jnp.float32, -bound, bound)
    conv_b = jax.random.uniform(kb, (C_out,), jnp.float32, -bound, bound)
    gamma = jax.random.uniform(kg, (C_out,), jnp.float32, 0.5, 1.5)
    beta = jax.random.uniform(kbe, (C_out,), jnp.float32, -0.1, 0.1)

    # block_m=64 deliberately exercises the multi-tile (pipelined, megacore-parallel) path
    # and the per-tile partial-stat reduction at this toy problem size.
    out = conv_block_forward(x, conv_w, conv_b, gamma, beta, stride=stride, block_m=64)
    out = jax.block_until_ready(out)

    H_out = (H + 2 * ((k - 1) // 2) - k) // stride + 1
    assert out.shape == (N, C_out, H_out, H_out), out.shape

    # 1) Kernel correctness: compare against a plain-JAX replica of the same math (bf16 matmul).
    ref_q = jax.block_until_ready(
        conv_block_reference_quantized(x, conv_w, conv_b, gamma, beta, stride=stride))
    err_q = float(jnp.max(jnp.abs(out - ref_q)))
    assert err_q < 2e-3, f"kernel mismatch vs quantized reference: {err_q}"

    # 2) End-to-end semantics vs the exact f32 PyTorch-equivalent reference
    #    (looser bound: the only difference is the bf16 cast of the matmul operands).
    ref_f32 = jax.block_until_ready(
        conv_block_reference(x, conv_w, conv_b, gamma, beta, stride=stride))
    err_f = float(jnp.max(jnp.abs(out - ref_f32)))
    assert err_f < 5e-2, f"mismatch vs f32 reference: {err_f}"

    print("KERNEL_OK")
</pallas_src>

<mosaic_0001>
module attributes {stable_mosaic.version = 11 : i64} {
  func.func @_conv_stats_kernel(%arg0: i32, %arg1: memref<64x128xbf16, #tpu.memory_space<vmem>>, %arg2: memref<128x128xbf16, #tpu.memory_space<vmem>>, %arg3: memref<64x128xf32, #tpu.memory_space<vmem>>, %arg4: memref<1x2x128xf32, #tpu.memory_space<vmem>>) attributes {dimension_semantics = [#tpu.dimension_semantics<parallel>], iteration_bounds = array<i64: 2>, scalar_prefetch = 0 : i64, scratch_operands = 0 : i64, tpu.core_type = #tpu.core_type<tc>, window_params = [{transform_indices = @transform_0, window_bounds = array<i64: 64, 128>}, {pipeline_mode = #tpu.pipeline_mode<synchronous>, transform_indices = @transform_1, window_bounds = array<i64: 128, 128>}, {transform_indices = @transform_2, window_bounds = array<i64: 64, 128>}, {transform_indices = @transform_3, window_bounds = array<i64: 1, 2, 128>}]} {
    %c0 = arith.constant 0 : index
    %c0_0 = arith.constant 0 : index
    %0 = vector.load %arg1[%c0, %c0_0] : memref<64x128xbf16, #tpu.memory_space<vmem>>, vector<64x128xbf16>
    %c0_1 = arith.constant 0 : index
    %c0_2 = arith.constant 0 : index
    %1 = vector.load %arg2[%c0_1, %c0_2] : memref<128x128xbf16, #tpu.memory_space<vmem>>, vector<128x128xbf16>
    %cst = arith.constant dense<0.000000e+00> : vector<64x128xf32>
    %2 = tpu.matmul %0, %1, %cst {dimension_numbers = #tpu.dot_dimension_numbers<[1], [0], [0], [1], [0, 0, 1, 1], [], []>} : vector<64x128xbf16>, vector<128x128xbf16>, vector<64x128xf32> -> vector<64x128xf32>
    %c0_3 = arith.constant 0 : index
    %c0_4 = arith.constant 0 : index
    %3 = vector.load %arg3[%c0_3, %c0_4] : memref<64x128xf32, #tpu.memory_space<vmem>>, vector<64x128xf32>
    tpu.vector_store %arg3[%c0_3, %c0_4], %2 {strides = array<i32>} : memref<64x128xf32, #tpu.memory_space<vmem>>, vector<64x128xf32>,
    %cst_5 = arith.constant dense<0.000000e+00> : vector<128xf32>
    %4 = vector.multi_reduction <add>, %2, %cst_5 [0] : vector<64x128xf32> to vector<128xf32>
    %5 = vector.shape_cast %4 : vector<128xf32> to vector<1x128xf32>
    %6 = arith.mulf %2, %2 : vector<64x128xf32>
    %cst_6 = arith.constant dense<0.000000e+00> : vector<128xf32>
    %7 = vector.multi_reduction <add>, %6, %cst_6 [0] : vector<64x128xf32> to vector<128xf32>
    %8 = vector.shape_cast %7 : vector<128xf32> to vector<1x128xf32>
    %9 = tpu.concatenate %5, %8 in 0 : vector<1x128xf32>, vector<1x128xf32> -> vector<2x128xf32>
    %10 = vector.shape_cast %9 : vector<2x128xf32> to vector<1x2x128xf32>
    %c0_7 = arith.constant 0 : index
    %c0_8 = arith.constant 0 : index
    %c0_9 = arith.constant 0 : index
    %11 = vector.load %arg4[%c0_7, %c0_8, %c0_9] : memref<1x2x128xf32, #tpu.memory_space<vmem>>, vector<1x2x128xf32>
    tpu.vector_store %arg4[%c0_7, %c0_8, %c0_9], %10 {strides = array<i32>} : memref<1x2x128xf32, #tpu.memory_space<vmem>>, vector<1x2x128xf32>,
    return
  }
  func.func @transform_0(%arg0: i32) -> (i32, i32) {
    %c0_i32 = arith.constant 0 : i32
    %c0_i32_0 = arith.constant 0 : i32
    return %arg0, %c0_i32 : i32, i32
  }
  func.func @transform_1(%arg0: i32) -> (i32, i32) {
    %c0_i32 = arith.constant 0 : i32
    %c0_i32_0 = arith.constant 0 : i32
    %c0_i32_1 = arith.constant 0 : i32
    return %c0_i32, %c0_i32_0 : i32, i32
  }
  func.func @transform_2(%arg0: i32) -> (i32, i32) {
    %c0_i32 = arith.constant 0 : i32
    %c0_i32_0 = arith.constant 0 : i32
    return %arg0, %c0_i32 : i32, i32
  }
  func.func @transform_3(%arg0: i32) -> (i32, i32, i32) {
    %c0_i32 = arith.constant 0 : i32
    %c0_i32_0 = arith.constant 0 : i32
    %c0_i32_1 = arith.constant 0 : i32
    return %arg0, %c0_i32, %c0_i32_0 : i32, i32, i32
  }
}

module attributes {stable_mosaic.version = 11 : i64} {
  func.func @_bn_relu_kernel(%arg0: i32, %arg1: memref<64x128xf32, #tpu.memory_space<vmem>>, %arg2: memref<1x128xf32, #tpu.memory_space<vmem>>, %arg3: memref<1x128xf32, #tpu.memory_space<vmem>>, %arg4: memref<64x128xf32, #tpu.memory_space<vmem>>) attributes {dimension_semantics = [#tpu.dimension_semantics<parallel>], iteration_bounds = array<i64: 2>, scalar_prefetch = 0 : i64, scratch_operands = 0 : i64, tpu.core_type = #tpu.core_type<tc>, window_params = [{transform_indices = @transform_0, window_bounds = array<i64: 64, 128>}, {pipeline_mode = #tpu.pipeline_mode<synchronous>, transform_indices = @transform_1, window_bounds = array<i64: 1, 128>}, {pipeline_mode = #tpu.pipeline_mode<synchronous>, transform_indices = @transform_2, window_bounds = array<i64: 1, 128>}, {transform_indices = @transform_3, window_bounds = array<i64: 64, 128>}]} {
    %c0 = arith.constant 0 : index
    %c0_0 = arith.constant 0 : index
    %0 = vector.load %arg1[%c0, %c0_0] : memref<64x128xf32, #tpu.memory_space<vmem>>, vector<64x128xf32>
    %c0_1 = arith.constant 0 : index
    %c0_2 = arith.constant 0 : index
    %1 = vector.load %arg2[%c0_1, %c0_2] : memref<1x128xf32, #tpu.memory_space<vmem>>, vector<1x128xf32>
    %2 = vector.broadcast %1 : vector<1x128xf32> to vector<64x128xf32>
    %3 = arith.mulf %0, %2 : vector<64x128xf32>
    %c0_3 = arith.constant 0 : index
    %c0_4 = arith.constant 0 : index
    %4 = vector.load %arg3[%c0_3, %c0_4] : memref<1x128xf32, #tpu.memory_space<vmem>>, vector<1x128xf32>
    %5 = vector.broadcast %4 : vector<1x128xf32> to vector<64x128xf32>
    %6 = arith.addf %3, %5 : vector<64x128xf32>
    %cst = arith.constant 0.000000e+00 : f32
    %7 = vector.broadcast %cst : f32 to vector<64x128xf32>
    %8 = arith.maximumf %6, %7 : vector<64x128xf32>
    %c0_5 = arith.constant 0 : index
    %c0_6 = arith.constant 0 : index
    %9 = vector.load %arg4[%c0_5, %c0_6] : memref<64x128xf32, #tpu.memory_space<vmem>>, vector<64x128xf32>
    tpu.vector_store %arg4[%c0_5, %c0_6], %8 {strides = array<i32>} : memref<64x128xf32, #tpu.memory_space<vmem>>, vector<64x128xf32>,
    return
  }
  func.func @transform_0(%arg0: i32) -> (i32, i32) {
    %c0_i32 = arith.constant 0 : i32
    %c0_i32_0 = arith.constant 0 : i32
    return %arg0, %c0_i32 : i32, i32
  }
  func.func @transform_1(%arg0: i32) -> (i32, i32) {
    %c0_i32 = arith.constant 0 : i32
    %c0_i32_0 = arith.constant 0 : i32
    %c0_i32_1 = arith.constant 0 : i32
    return %c0_i32, %c0_i32_0 : i32, i32
  }
  func.func @transform_2(%arg0: i32) -> (i32, i32) {
    %c0_i32 = arith.constant 0 : i32
    %c0_i32_0 = arith.constant 0 : i32
    %c0_i32_1 = arith.constant 0 : i32
    return %c0_i32, %c0_i32_0 : i32, i32
  }
  func.func @transform_3(%arg0: i32) -> (i32, i32) {
    %c0_i32 = arith.constant 0 : i32
    %c0_i32_0 = arith.constant 0 : i32
    return %arg0, %c0_i32 : i32, i32
  }
}

</mosaic_0001>

<llo_original>
// kernel: conv_block_forward.3
$region0: #{conv_block_forward.3}
  #allocation0 [shape = 'u32[]', space=smem, size = 0x4, offset = 0x4, fixed_abs, tag = 'smem constant byte address 0x4 - core index']
  #allocation1 [shape = 'u32[144,128]{1,0:T(1,128)}', space=vmem, size = 0x12000, scoped, tag = 'internal scratch']
  %s0 = inlined_call_operand.vmem [shape: f32[128,128], index: 0, kind: input, shape index: {}]
  %s1 = inlined_call_operand.vmem [shape: f32[1,128], index: 1, kind: input, shape index: {}]
  %s2 = inlined_call_operand.vmem [shape: f32[1,128], index: 2, kind: input, shape index: {}]
  %s3 = inlined_call_operand.vmem [shape: f32[128,128], index: 3, kind: output, shape index: {}]
  %s4 = sld [smem:[#allocation0]]
  $region45: #{conv_block_forward.3} parent=0
    _
  %s6 = ssub.s32 1, %s4
  %s7 = scalar_select 0, %s6, %s4
  loop: start=0, step=1, limit=4
  $region2: #{conv_block_forward.3} parent=0 // loop_pre_header
    _
  $region3: #{conv_block_forward.3} parent=0 // loop_header
    %s9 = sphi 0, %s13
    %p10 = scmp.ge.s32.totalorder %s9, 4
    %s19 = sphi 0, %s21
    %s22 = sphi 0, %s19
    %s23 = sphi 0, %s22
    %s39 = sphi 0, %s23
    %s43 = sphi 0, %s43
    %s45 = sphi 0, %s43
    %s46 = sphi 0, %s45
    %s60 = sphi 0, %s46
    %s64 = sphi 0, %s64
    %s66 = sphi 0, %s64
    %s67 = sphi 0, %s66
    %s81 = sphi 0, %s67
    %s87 = sphi 0, %s89
    %s90 = sphi 0, %s87
    %s91 = sphi 0, %s90
    %s107 = sphi 0, %s91
  $region4: #{conv_block_forward.3} parent=0 // loop_header_branch
    %12 = sbr.rel (%p10) target = $region8
  $region5: #{conv_block_forward.3} parent=0 // loop_body
    %s14 = ssub.s32 %s9, 1
    %s15 = ssub.s32 %s9, 2
    %s16 = sadd.s32 %s9, 1
    %s17 = ssub.s32 %s9, %s16
    %p18 = scmp.eq.s32.totalorder %s17, 0
    %s20 = sadd.s32 %s19, 1
    %s21 = scalar_select %p18, %s19, %s20
    %p24 = pneg %p18
    %p25 = scmp.eq.s32.totalorder %s9, 1
    %p26 = por %p24, %p25
    %p27 = scmp.ne.s32.totalorder %s19, %s22
    %p28 = scmp.eq.s32.totalorder %s9, 0
    %p29 = por %p27, %p28
    %p30 = scmp.ne.s32.totalorder %s19, %s22
    %p31 = scmp.eq.s32.totalorder %s14, 1
    %p32 = por %p30, %p31
    %p33 = scmp.ne.s32.totalorder %s22, %s23
    %p34 = scmp.eq.s32.totalorder %s14, 0
    %p35 = por %p33, %p34
    %p36 = scmp.ne.s32.totalorder %s22, %s23
    %p37 = scmp.eq.s32.totalorder %s15, 1
    %p38 = por %p36, %p37
    %p40 = scmp.ne.s32.totalorder %s23, %s39
    %p41 = scmp.eq.s32.totalorder %s15, 0
    %p42 = por %p40, %p41
    %s44 = sadd.s32 %s43, 1
    %p47 = scmp.eq.s32.totalorder %s9, 1
    %p48 = scmp.ne.s32.totalorder %s43, %s45
    %p49 = scmp.eq.s32.totalorder %s9, 0
    %p50 = por %p48, %p49
    %p51 = scmp.ne.s32.totalorder %s43, %s45
    %p52 = scmp.eq.s32.totalorder %s14, 1
    %p53 = por %p51, %p52
    %p54 = scmp.ne.s32.totalorder %s45, %s46
    %p55 = scmp.eq.s32.totalorder %s14, 0
    %p56 = por %p54, %p55
    %p57 = scmp.ne.s32.totalorder %s45, %s46
    %p58 = scmp.eq.s32.totalorder %s15, 1
    %p59 = por %p57, %p58
    %p61 = scmp.ne.s32.totalorder %s46, %s60
    %p62 = scmp.eq.s32.totalorder %s15, 0
    %p63 = por %p61, %p62
    %s65 = sadd.s32 %s64, 1
    %p68 = scmp.eq.s32.totalorder %s9, 1
    %p69 = scmp.ne.s32.totalorder %s64, %s66
    %p70 = scmp.eq.s32.totalorder %s9, 0
    %p71 = por %p69, %p70
    %p72 = scmp.ne.s32.totalorder %s64, %s66
    %p73 = scmp.eq.s32.totalorder %s14, 1
    %p74 = por %p72, %p73
    %p75 = scmp.ne.s32.totalorder %s66, %s67
    %p76 = scmp.eq.s32.totalorder %s14, 0
    %p77 = por %p75, %p76
    %p78 = scmp.ne.s32.totalorder %s66, %s67
    %p79 = scmp.eq.s32.totalorder %s15, 1
    %p80 = por %p78, %p79
    %p82 = scmp.ne.s32.totalorder %s67, %s81
    %p83 = scmp.eq.s32.totalorder %s15, 0
    %p84 = por %p82, %p83
    %s85 = ssub.s32 %s9, %s16
    %p86 = scmp.eq.s32.totalorder %s85, 0
    %s88 = sadd.s32 %s87, 1
    %s89 = scalar_select %p86, %s87, %s88
    %p92 = pneg %p86
    %p93 = scmp.eq.s32.totalorder %s9, 1
    %p94 = por %p92, %p93
    %p95 = scmp.ne.s32.totalorder %s87, %s90
    %p96 = scmp.eq.s32.totalorder %s9, 0
    %p97 = por %p95, %p96
    %p98 = scmp.ne.s32.totalorder %s87, %s90
    %p99 = scmp.eq.s32.totalorder %s14, 1
    %p100 = por %p98, %p99
    %p101 = scmp.ne.s32.totalorder %s90, %s91
    %p102 = scmp.eq.s32.totalorder %s14, 0
    %p103 = por %p101, %p102
    %p104 = scmp.ne.s32.totalorder %s90, %s91
    %p105 = scmp.eq.s32.totalorder %s15, 1
    %p106 = por %p104, %p105
    %p108 = scmp.ne.s32.totalorder %s91, %s107
    %p109 = scmp.eq.s32.totalorder %s15, 0
    %p110 = por %p108, %p109
    %p111 = scmp.le.s32.totalorder 1, %s9
    %p112 = scmp.lt.s32.totalorder %s9, 3
    %p113 = pnand %p111, %p112
    %p114 = pneg %p113
    // Predicated region
    $region9: #{conv_block_forward.3} parent=5 // pred_check
      _
    $region10: #{conv_block_forward.3} parent=5 // pred_check_branch
      %116 = sbr.rel (%p113) target = $region12
    $region11: #{conv_block_forward.3} parent=5 // pred_region
      %s117 = ssub.s32 %s9, 1
      // Predicated region
      $region13: #{conv_block_forward.3} parent=11 // pred_check
        %p118 = pneg %p56
      $region14: #{conv_block_forward.3} parent=11 // pred_check_branch
        %120 = sbr.rel (%p118) target = $region16
      $region15: #{conv_block_forward.3} parent=11 // pred_region
        _
      $region16: #{conv_block_forward.3} parent=11 // pred_fallthru
        _
      // Predicated region
      $region17: #{conv_block_forward.3} parent=11 // pred_check
        %p121 = pneg %p77
      $region18: #{conv_block_forward.3} parent=11 // pred_check_branch
        %123 = sbr.rel (%p121) target = $region20
      $region19: #{conv_block_forward.3} parent=11 // pred_region
        _
      $region20: #{conv_block_forward.3} parent=11 // pred_fallthru
        _
    $region12: #{conv_block_forward.3} parent=5 // pred_fallthru
      _
    %p124 = scmp.lt.s32.totalorder %s9, 2
    // Predicated region
    $region21: #{conv_block_forward.3} parent=5 // pred_check
      %p125 = pneg %p124
    $region22: #{conv_block_forward.3} parent=5 // pred_check_branch
      %127 = sbr.rel (%p125) target = $region24
    $region23: #{conv_block_forward.3} parent=5 // pred_region
      // Predicated region
      $region25: #{conv_block_forward.3} parent=23 // pred_check
        %p128 = pneg %p29
      $region26: #{conv_block_forward.3} parent=23 // pred_check_branch
        %130 = sbr.rel (%p128) target = $region28
      $region27: #{conv_block_forward.3} parent=23 // pred_region
        %s131 = smul.u32 8, %s9
        %p132 = scmp.lt.s32.totalorder %s131, 15
        %s133 = scalar_select %p132, %s131, 15
        %s134 = smul.addr %s133, 8
        %s135 = scalar_lea.vmem %s0, %s134
        %s136 = smul.u32 8, %s9
      $region28: #{conv_block_forward.3} parent=23 // pred_fallthru
        _
    $region24: #{conv_block_forward.3} parent=5 // pred_fallthru
      _
    %p137 = scmp.le.s32.totalorder 1, %s9
    %p138 = scmp.lt.s32.totalorder %s9, 3
    %p139 = pnand %p137, %p138
    %p140 = pneg %p139
    // Predicated region
    $region29: #{conv_block_forward.3} parent=5 // pred_check
      _
    $region30: #{conv_block_forward.3} parent=5 // pred_check_branch
      %142 = sbr.rel (%p139) target = $region32
    $region31: #{conv_block_forward.3} parent=5 // pred_region
      %s143 = ssub.s32 %s9, 1
      %s144 = smul.u32 8, %s14
      %p145 = scmp.lt.s32.totalorder %s144, 15
      %s146 = scalar_select %p145, %s144, 15
      %s147 = smul.addr %s146, 8
      %s148 = scalar_lea.vmem %s0, %s147
      %p149 = pneg %p35
      %p150 = pneg %p32
      %p151 = pneg %p56
      %p152 = pneg %p53
      %p153 = pneg %p77
      %p154 = pneg %p74
      %p155 = pneg %p103
      %p156 = pneg %p100
      %s157 = smul.u32 8, %s14
      %p158 = scmp.lt.s32.totalorder %s157, 15
      %s159 = scalar_select %p158, %s157, 15
      %s160 = smul.addr %s159, 8
      %s161 = scalar_lea.vmem %s3, %s160
      %s162 = smul.u32 8, %s14
      %p163 = scmp.lt.s32.totalorder %s162, 15
      %s164 = scalar_select %p163, %s162, 15
      %s165 = smul.addr %s164, 8
      %s166 = scalar_lea.vmem %s0, %s165
      %s167 = smul.u32 8, %s14
      %s168 = smul.u32 8, %s14
      %p169 = scmp.lt.s32.totalorder %s168, 15
      %s170 = scalar_select %p169, %s168, 15
      %s171 = smul.addr %s170, 8
      %s172 = scalar_lea.vmem %s3, %s171
      %s173 = smul.u32 8, %s14
      %v174 = vld [vmem:[%s166] sm:$0xff]
      %v175 = vld [vmem:[%s166 + $0x8] sm:$0xff]
      %v176 = vld [vmem:[%s166 + $0x10] sm:$0xff]
      %v177 = vld [vmem:[%s166 + $0x18] sm:$0xff]
      %v178 = vld [vmem:[%s166 + $0x20] sm:$0xff]
      %v179 = vld [vmem:[%s166 + $0x28] sm:$0xff]
      %v180 = vld [vmem:[%s166 + $0x30] sm:$0xff]
      %v181 = vld [vmem:[%s166 + $0x38] sm:$0xff]
      %v182 = vld [vmem:[%s1] sm:$0x1]
      %v184 = vlaneseq
      %v185 = vshrl.u32 %v184, 7
      %v186 = vsub.s32 0, %v185
      %v187 = vrot.slane %v182, %v186
      %v189 = vmul.f32 %v174, %v187
      %v190 = vmul.f32 %v175, %v187
      %v191 = vmul.f32 %v176, %v187
      %v192 = vmul.f32 %v177, %v187
      %v193 = vmul.f32 %v178, %v187
      %v194 = vmul.f32 %v179, %v187
      %v195 = vmul.f32 %v180, %v187
      %v196 = vmul.f32 %v181, %v187
      %v197 = vld [vmem:[%s2] sm:$0x1]
      %v199 = vlaneseq
      %v200 = vshrl.u32 %v199, 7
      %v201 = vsub.s32 0, %v200
      %v202 = vrot.slane %v197, %v201
      %v204 = vadd.f32 %v189, %v202
      %v205 = vadd.f32 %v190, %v202
      %v206 = vadd.f32 %v191, %v202
      %v207 = vadd.f32 %v192, %v202
      %v208 = vadd.f32 %v193, %v202
      %v209 = vadd.f32 %v194, %v202
      %v210 = vadd.f32 %v195, %v202
      %v211 = vadd.f32 %v196, %v202
      %v212 = vmax.f32 %v204, 0.0
      %v213 = vmax.f32 %v205, 0.0
      %v214 = vmax.f32 %v206, 0.0
      %v215 = vmax.f32 %v207, 0.0
      %v216 = vmax.f32 %v208, 0.0
      %v217 = vmax.f32 %v209, 0.0
      %v218 = vmax.f32 %v210, 0.0
      %v219 = vmax.f32 %v211, 0.0
      %220 = vst [vmem:[%s172] sm:$0xff] %v212
      %221 = vst [vmem:[%s172 + $0x8] sm:$0xff] %v213
      %222 = vst [vmem:[%s172 + $0x10] sm:$0xff] %v214
      %223 = vst [vmem:[%s172 + $0x18] sm:$0xff] %v215
      %224 = vst [vmem:[%s172 + $0x20] sm:$0xff] %v216
      %225 = vst [vmem:[%s172 + $0x28] sm:$0xff] %v217
      %226 = vst [vmem:[%s172 + $0x30] sm:$0xff] %v218
      %227 = vst [vmem:[%s172 + $0x38] sm:$0xff] %v219
      %s228 = smul.u32 8, %s14
      %p229 = scmp.lt.s32.totalorder %s228, 15
      %s230 = scalar_select %p229, %s228, 15
      %s231 = smul.addr %s230, 8
      %s232 = scalar_lea.vmem %s3, %s231
      // Predicated region
      $region33: #{conv_block_forward.3} parent=31 // pred_check
        %p233 = pneg %p100
      $region34: #{conv_block_forward.3} parent=31 // pred_check_branch
        %235 = sbr.rel (%p233) target = $region36
      $region35: #{conv_block_forward.3} parent=31 // pred_region
        %s236 = smul.u32 8, %s14
      $region36: #{conv_block_forward.3} parent=31 // pred_fallthru
        _
    $region32: #{conv_block_forward.3} parent=5 // pred_fallthru
      _
    %p237 = scmp.le.s32.totalorder 2, %s9
    // Predicated region
    $region37: #{conv_block_forward.3} parent=5 // pred_check
      %p238 = pneg %p237
    $region38: #{conv_block_forward.3} parent=5 // pred_check_branch
      %240 = sbr.rel (%p238) target = $region40
    $region39: #{conv_block_forward.3} parent=5 // pred_region
      %s241 = ssub.s32 %s9, 2
      // Predicated region
      $region41: #{conv_block_forward.3} parent=39 // pred_check
        %p242 = pneg %p106
      $region42: #{conv_block_forward.3} parent=39 // pred_check_branch
        %244 = sbr.rel (%p242) target = $region44
      $region43: #{conv_block_forward.3} parent=39 // pred_region
        %s245 = smul.u32 8, %s15
        %p246 = scmp.lt.s32.totalorder %s245, 15
        %s247 = scalar_select %p246, %s245, 15
        %s248 = smul.addr %s247, 8
        %s249 = scalar_lea.vmem %s3, %s248
      $region44: #{conv_block_forward.3} parent=39 // pred_fallthru
        _
    $region40: #{conv_block_forward.3} parent=5 // pred_fallthru
      _
  $region6: #{conv_block_forward.3} parent=0 // loop_footer
    %s13 = sadd.s32 1, %s9
  $region7: #{conv_block_forward.3} parent=0 // loop_footer_branch
    %8 = sbr.rel target = $region3
  $region8: #{conv_block_forward.3} parent=0 // loop_exit
    _

// kernel: conv_block_forward.2
$region0: #{conv_block_forward.2}
  #allocation0 [shape = 'u32[]', space=smem, size = 0x4, offset = 0x4, fixed_abs, tag = 'smem constant byte address 0x4 - core index']
  #allocation1 [shape = 'u32[144,128]{1,0:T(1,128)}', space=vmem, size = 0x12000, scoped, tag = 'internal scratch']
  %s0 = inlined_call_operand.vmem [shape: bf16[128,128], index: 0, kind: input, shape index: {}]
  %s1 = inlined_call_operand.vmem [shape: bf16[128,128], index: 1, kind: input, shape index: {}]
  %s2 = inlined_call_operand.vmem [shape: f32[128,128], index: 2, kind: output, shape index: {0}]
  %s3 = inlined_call_operand.vmem [shape: f32[2,2,128], index: 3, kind: output, shape index: {1}]
  %4 = xla_tuple %s2, %s3
  %s5 = sld [smem:[#allocation0]]
  $region49: #{conv_block_forward.2} parent=0
    _
  %s7 = ssub.s32 1, %s5
  %s8 = scalar_select 0, %s7, %s5
  loop: start=0, step=1, limit=4
  $region2: #{conv_block_forward.2} parent=0 // loop_pre_header
    _
  $region3: #{conv_block_forward.2} parent=0 // loop_header
    %s10 = sphi 0, %s14
    %p11 = scmp.ge.s32.totalorder %s10, 4
    %s20 = sphi 0, %s22
    %s23 = sphi 0, %s20
    %s24 = sphi 0, %s23
    %s40 = sphi 0, %s24
    %s44 = sphi 0, %s44
    %s46 = sphi 0, %s44
    %s47 = sphi 0, %s46
    %s61 = sphi 0, %s47
    %s67 = sphi 0, %s69
    %s70 = sphi 0, %s67
    %s71 = sphi 0, %s70
    %s87 = sphi 0, %s71
    %s93 = sphi 0, %s95
    %s96 = sphi 0, %s93
    %s97 = sphi 0, %s96
    %s113 = sphi 0, %s97
  $region4: #{conv_block_forward.2} parent=0 // loop_header_branch
    %13 = sbr.rel (%p11) target = $region8
  $region5: #{conv_block_forward.2} parent=0 // loop_body
    %s15 = ssub.s32 %s10, 1
    %s16 = ssub.s32 %s10, 2
    %s17 = sadd.s32 %s10, 1
    %s18 = ssub.s32 %s10, %s17
    %p19 = scmp.eq.s32.totalorder %s18, 0
    %s21 = sadd.s32 %s20, 1
    %s22 = scalar_select %p19, %s20, %s21
    %p25 = pneg %p19
    %p26 = scmp.eq.s32.totalorder %s10, 1
    %p27 = por %p25, %p26
    %p28 = scmp.ne.s32.totalorder %s20, %s23
    %p29 = scmp.eq.s32.totalorder %s10, 0
    %p30 = por %p28, %p29
    %p31 = scmp.ne.s32.totalorder %s20, %s23
    %p32 = scmp.eq.s32.totalorder %s15, 1
    %p33 = por %p31, %p32
    %p34 = scmp.ne.s32.totalorder %s23, %s24
    %p35 = scmp.eq.s32.totalorder %s15, 0
    %p36 = por %p34, %p35
    %p37 = scmp.ne.s32.totalorder %s23, %s24
    %p38 = scmp.eq.s32.totalorder %s16, 1
    %p39 = por %p37, %p38
    %p41 = scmp.ne.s32.totalorder %s24, %s40
    %p42 = scmp.eq.s32.totalorder %s16, 0
    %p43 = por %p41, %p42
    %s45 = sadd.s32 %s44, 1
    %p48 = scmp.eq.s32.totalorder %s10, 1
    %p49 = scmp.ne.s32.totalorder %s44, %s46
    %p50 = scmp.eq.s32.totalorder %s10, 0
    %p51 = por %p49, %p50
    %p52 = scmp.ne.s32.totalorder %s44, %s46
    %p53 = scmp.eq.s32.totalorder %s15, 1
    %p54 = por %p52, %p53
    %p55 = scmp.ne.s32.totalorder %s46, %s47
    %p56 = scmp.eq.s32.totalorder %s15, 0
    %p57 = por %p55, %p56
    %p58 = scmp.ne.s32.totalorder %s46, %s47
    %p59 = scmp.eq.s32.totalorder %s16, 1
    %p60 = por %p58, %p59
    %p62 = scmp.ne.s32.totalorder %s47, %s61
    %p63 = scmp.eq.s32.totalorder %s16, 0
    %p64 = por %p62, %p63
    %s65 = ssub.s32 %s10, %s17
    %p66 = scmp.eq.s32.totalorder %s65, 0
    %s68 = sadd.s32 %s67, 1
    %s69 = scalar_select %p66, %s67, %s68
    %p72 = pneg %p66
    %p73 = scmp.eq.s32.totalorder %s10, 1
    %p74 = por %p72, %p73
    %p75 = scmp.ne.s32.totalorder %s67, %s70
    %p76 = scmp.eq.s32.totalorder %s10, 0
    %p77 = por %p75, %p76
    %p78 = scmp.ne.s32.totalorder %s67, %s70
    %p79 = scmp.eq.s32.totalorder %s15, 1
    %p80 = por %p78, %p79
    %p81 = scmp.ne.s32.totalorder %s70, %s71
    %p82 = scmp.eq.s32.totalorder %s15, 0
    %p83 = por %p81, %p82
    %p84 = scmp.ne.s32.totalorder %s70, %s71
    %p85 = scmp.eq.s32.totalorder %s16, 1
    %p86 = por %p84, %p85
    %p88 = scmp.ne.s32.totalorder %s71, %s87
    %p89 = scmp.eq.s32.totalorder %s16, 0
    %p90 = por %p88, %p89
    %s91 = ssub.s32 %s10, %s17
    %p92 = scmp.eq.s32.totalorder %s91, 0
    %s94 = sadd.s32 %s93, 1
    %s95 = scalar_select %p92, %s93, %s94
    %p98 = pneg %p92
    %p99 = scmp.eq.s32.totalorder %s10, 1
    %p100 = por %p98, %p99
    %p101 = scmp.ne.s32.totalorder %s93, %s96
    %p102 = scmp.eq.s32.totalorder %s10, 0
    %p103 = por %p101, %p102
    %p104 = scmp.ne.s32.totalorder %s93, %s96
    %p105 = scmp.eq.s32.totalorder %s15, 1
    %p106 = por %p104, %p105
    %p107 = scmp.ne.s32.totalorder %s96, %s97
    %p108 = scmp.eq.s32.totalorder %s15, 0
    %p109 = por %p107, %p108
    %p110 = scmp.ne.s32.totalorder %s96, %s97
    %p111 = scmp.eq.s32.totalorder %s16, 1
    %p112 = por %p110, %p111
    %p114 = scmp.ne.s32.totalorder %s97, %s113
    %p115 = scmp.eq.s32.totalorder %s16, 0
    %p116 = por %p114, %p115
    %p117 = scmp.le.s32.totalorder 1, %s10
    %p118 = scmp.lt.s32.totalorder %s10, 3
    %p119 = pnand %p117, %p118
    %p120 = pneg %p119
    // Predicated region
    $region9: #{conv_block_forward.2} parent=5 // pred_check
      _
    $region10: #{conv_block_forward.2} parent=5 // pred_check_branch
      %122 = sbr.rel (%p119) target = $region12
    $region11: #{conv_block_forward.2} parent=5 // pred_region
      %s123 = ssub.s32 %s10, 1
      // Predicated region
      $region13: #{conv_block_forward.2} parent=11 // pred_check
        %p124 = pneg %p57
      $region14: #{conv_block_forward.2} parent=11 // pred_check_branch
        %126 = sbr.rel (%p124) target = $region16
      $region15: #{conv_block_forward.2} parent=11 // pred_region
        _
      $region16: #{conv_block_forward.2} parent=11 // pred_fallthru
        _
    $region12: #{conv_block_forward.2} parent=5 // pred_fallthru
      _
    %p127 = scmp.lt.s32.totalorder %s10, 2
    // Predicated region
    $region17: #{conv_block_forward.2} parent=5 // pred_check
      %p128 = pneg %p127
    $region18: #{conv_block_forward.2} parent=5 // pred_check_branch
      %130 = sbr.rel (%p128) target = $region20
    $region19: #{conv_block_forward.2} parent=5 // pred_region
      // Predicated region
      $region21: #{conv_block_forward.2} parent=19 // pred_check
        %p131 = pneg %p30
      $region22: #{conv_block_forward.2} parent=19 // pred_check_branch
        %133 = sbr.rel (%p131) target = $region24
      $region23: #{conv_block_forward.2} parent=19 // pred_region
        %s134 = smul.u32 8, %s10
        %p135 = scmp.lt.s32.totalorder %s134, 15
        %s136 = scalar_select %p135, %s134, 15
        %s137 = smul.addr %s136, 4
        %s138 = scalar_lea.vmem %s0, %s137
        %s139 = smul.u32 8, %s10
      $region24: #{conv_block_forward.2} parent=19 // pred_fallthru
        _
    $region20: #{conv_block_forward.2} parent=5 // pred_fallthru
      _
    %p140 = scmp.le.s32.totalorder 1, %s10
    %p141 = scmp.lt.s32.totalorder %s10, 3
    %p142 = pnand %p140, %p141
    %p143 = pneg %p142
    // Predicated region
    $region25: #{conv_block_forward.2} parent=5 // pred_check
      _
    $region26: #{conv_block_forward.2} parent=5 // pred_check_branch
      %145 = sbr.rel (%p142) target = $region28
    $region27: #{conv_block_forward.2} parent=5 // pred_region
      %s146 = ssub.s32 %s10, 1
      %s147 = smul.u32 8, %s15
      %p148 = scmp.lt.s32.totalorder %s147, 15
      %s149 = scalar_select %p148, %s147, 15
      %s150 = smul.addr %s149, 4
      %s151 = scalar_lea.vmem %s0, %s150
      %p152 = pneg %p36
      %p153 = pneg %p33
      %p154 = pneg %p57
      %p155 = pneg %p54
      %p156 = pneg %p83
      %p157 = pneg %p80
      %s158 = smul.u32 8, %s15
      %p159 = scmp.lt.s32.totalorder %s158, 15
      %s160 = scalar_select %p159, %s158, 15
      %s161 = smul.addr %s160, 8
      %s162 = scalar_lea.vmem %s2, %s161
      %p163 = pneg %p109
      %p164 = pneg %p106
      %p165 = scmp.lt.s32.totalorder %s15, 1
      %s166 = scalar_select %p165, %s15, 1
      %s167 = smul.addr %s166, 2
      %s168 = scalar_lea.vmem %s3, %s167
      %s169 = smul.u32 8, %s15
      %p170 = scmp.lt.s32.totalorder %s169, 15
      %s171 = scalar_select %p170, %s169, 15
      %s172 = smul.addr %s171, 4
      %s173 = scalar_lea.vmem %s0, %s172
      %s174 = smul.u32 8, %s15
      %s175 = smul.u32 8, %s15
      %p176 = scmp.lt.s32.totalorder %s175, 15
      %s177 = scalar_select %p176, %s175, 15
      %s178 = smul.addr %s177, 8
      %s179 = scalar_lea.vmem %s2, %s178
      %s180 = smul.u32 8, %s15
      %p181 = scmp.lt.s32.totalorder %s15, 1
      %s182 = scalar_select %p181, %s15, 1
      %s183 = smul.addr %s182, 2
      %s184 = scalar_lea.vmem %s3, %s183
      %v186 = vld [vmem:[%s173] sm:$0xf]
      %v187 = vld [vmem:[%s173 + $0x4] sm:$0xf]
      %v188 = vld [vmem:[%s173 + $0x8] sm:$0xf]
      %v189 = vld [vmem:[%s173 + $0xc] sm:$0xf]
      %v190 = vld [vmem:[%s173 + $0x10] sm:$0xf]
      %v191 = vld [vmem:[%s173 + $0x14] sm:$0xf]
      %v192 = vld [vmem:[%s173 + $0x18] sm:$0xf]
      %v193 = vld [vmem:[%s173 + $0x1c] sm:$0xf]
      %v194 = vld [vmem:[%s1] sm:$0xf]
      %v195 = vld [vmem:[%s1 + $0x4] sm:$0xf]
      %v196 = vld [vmem:[%s1 + $0x8] sm:$0xf]
      %v197 = vld [vmem:[%s1 + $0xc] sm:$0xf]
      %v198 = vld [vmem:[%s1 + $0x10] sm:$0xf]
      %v199 = vld [vmem:[%s1 + $0x14] sm:$0xf]
      %v200 = vld [vmem:[%s1 + $0x18] sm:$0xf]
      %v201 = vld [vmem:[%s1 + $0x1c] sm:$0xf]
      %v202 = vld [vmem:[%s1 + $0x20] sm:$0xf]
      %v203 = vld [vmem:[%s1 + $0x24] sm:$0xf]
      %v204 = vld [vmem:[%s1 + $0x28] sm:$0xf]
      %v205 = vld [vmem:[%s1 + $0x2c] sm:$0xf]
      %v206 = vld [vmem:[%s1 + $0x30] sm:$0xf]
      %v207 = vld [vmem:[%s1 + $0x34] sm:$0xf]
      %v208 = vld [vmem:[%s1 + $0x38] sm:$0xf]
      %v209 = vld [vmem:[%s1 + $0x3c] sm:$0xf]
      %v218 = vunpack.c.l.b16 %v186
      %v219 = vunpack.c.l.b16 %v187
      %v220 = vunpack.c.l.b16 %v188
      %v221 = vunpack.c.l.b16 %v189
      %v222 = vunpack.c.l.b16 %v190
      %v223 = vunpack.c.l.b16 %v191
      %v224 = vunpack.c.l.b16 %v192
      %v225 = vunpack.c.l.b16 %v193
      %v226 = vpack.c.b16 %v219, %v218
      %v227 = vpack.c.b16 %v221, %v220
      %v228 = vpack.c.b16 %v223, %v222
      %v229 = vpack.c.b16 %v225, %v224
      %v250 = vunpack.c.l.b16 %v194
      %v251 = vunpack.c.l.b16 %v195
      %v252 = vunpack.c.l.b16 %v196
      %v253 = vunpack.c.l.b16 %v197
      %v254 = vunpack.c.l.b16 %v198
      %v255 = vunpack.c.l.b16 %v199
      %v256 = vunpack.c.l.b16 %v200
      %v257 = vunpack.c.l.b16 %v201
      %v258 = vunpack.c.l.b16 %v202
      %v259 = vunpack.c.l.b16 %v203
      %v260 = vunpack.c.l.b16 %v204
      %v261 = vunpack.c.l.b16 %v205
      %v262 = vunpack.c.l.b16 %v206
      %v263 = vunpack.c.l.b16 %v207
      %v264 = vunpack.c.l.b16 %v208
      %v265 = vunpack.c.l.b16 %v209
      %v266 = vpack.c.b16 %v251, %v250
      %v267 = vpack.c.b16 %v253, %v252
      %v268 = vpack.c.b16 %v255, %v254
      %v269 = vpack.c.b16 %v257, %v256
      %v270 = vpack.c.b16 %v259, %v258
      %v271 = vpack.c.b16 %v261, %v260
      %v272 = vpack.c.b16 %v263, %v262
      %v273 = vpack.c.b16 %v265, %v264
      %282 = vmatprep.subr.bf16.mxu0 0
      %283 = vmatpush1.bf16.msra.mxu0 %v266
      %284 = vmatprep.subr.bf16.mxu0 0
      %285 = vmatpush1.bf16.msra.mxu0 %v267
      %286 = vmatprep.subr.bf16.mxu0 0
      %287 = vmatpush1.bf16.msra.mxu0 %v268
      %288 = vmatprep.subr.bf16.mxu0 0
      %289 = vmatpush1.bf16.msra.mxu0 %v269
      %290 = vmatprep.subr.bf16.mxu0 0
      %291 = vmatpush1.bf16.msra.mxu0 %v270
      %292 = vmatprep.subr.bf16.mxu0 0
      %293 = vmatpush1.bf16.msra.mxu0 %v271
      %294 = vmatprep.subr.bf16.mxu0 0
      %295 = vmatpush1.bf16.msra.mxu0 %v272
      %296 = vmatprep.subr.bf16.mxu0 0
      %297 = vmatpush1.bf16.msra.mxu0 %v273
      %298 = vmatprep.subr.bf16.mxu0 0
      %299 = vmatpush1.bf16.msra.mxu0 0
      %300 = vmatprep.subr.bf16.mxu0 0
      %301 = vmatpush1.bf16.msra.mxu0 0
      %302 = vmatprep.subr.bf16.mxu0 0
      %303 = vmatpush1.bf16.msra.mxu0 0
      %304 = vmatprep.subr.bf16.mxu0 0
      %305 = vmatpush1.bf16.msra.mxu0 0
      %306 = vmatprep.subr.bf16.mxu0 0
      %307 = vmatpush1.bf16.msra.mxu0 0
      %308 = vmatprep.subr.bf16.mxu0 0
      %309 = vmatpush1.bf16.msra.mxu0 0
      %310 = vmatprep.subr.bf16.mxu0 0
      %311 = vmatpush1.bf16.msra.mxu0 0
      %312 = vmatprep.subr.bf16.mxu0 0
      %313 = vmatpush1.bf16.msra.mxu0 0
      %314 = vmatprep.mubr.bf16.mxu0 0
      %315 = vmatmul.mubr.bf16.gmra.mrb[0].mxu0 %v226
      %v316 = vpop.f32.mrb[0].mxu0
      %v317 = vadd.f32 0.0, %v316
      %v318 = vpop.f32.mrb[0].mxu0
      %v319 = vpop.f32.mrb[0].mxu0
      %v320 = vadd.f32 0.0, %v319
      %v321 = vpop.f32.mrb[0].mxu0
      %322 = vmatprep.mubr.bf16.mxu0 0
      %323 = vmatmul.mubr.bf16.gmra.mrb[0].mxu0 %v227
      %v324 = vpop.f32.mrb[0].mxu0
      %v325 = vadd.f32 0.0, %v324
      %v326 = vpop.f32.mrb[0].mxu0
      %v327 = vpop.f32.mrb[0].mxu0
      %v328 = vadd.f32 0.0, %v327
      %v329 = vpop.f32.mrb[0].mxu0
      %330 = vmatprep.mubr.bf16.mxu0 0
      %331 = vmatmul.mubr.bf16.gmra.mrb[0].mxu0 %v228
      %v332 = vpop.f32.mrb[0].mxu0
      %v333 = vadd.f32 0.0, %v332
      %v334 = vpop.f32.mrb[0].mxu0
      %v335 = vpop.f32.mrb[0].mxu0
      %v336 = vadd.f32 0.0, %v335
      %v337 = vpop.f32.mrb[0].mxu0
      %338 = vmatprep.mubr.bf16.mxu0 0
      %339 = vmatmul.mubr.bf16.gmra.mrb[0].mxu0 %v229
      %v340 = vpop.f32.mrb[0].mxu0
      %v341 = vadd.f32 0.0, %v340
      %v342 = vpop.f32.mrb[0].mxu0
      %v343 = vpop.f32.mrb[0].mxu0
      %v344 = vadd.f32 0.0, %v343
      %v345 = vpop.f32.mrb[0].mxu0
      %346 = vdwg.mxu0
      %347 = vst [vmem:[%s179] sm:$0xff] %v317
      %348 = vst [vmem:[%s179 + $0x8] sm:$0xff] %v320
      %349 = vst [vmem:[%s179 + $0x10] sm:$0xff] %v325
      %350 = vst [vmem:[%s179 + $0x18] sm:$0xff] %v328
      %351 = vst [vmem:[%s179 + $0x20] sm:$0xff] %v333
      %352 = vst [vmem:[%s179 + $0x28] sm:$0xff] %v336
      %353 = vst [vmem:[%s179 + $0x30] sm:$0xff] %v341
      %354 = vst [vmem:[%s179 + $0x38] sm:$0xff] %v344
      %v355 = vadd.f32 %v317, %v320
      %v356 = vadd.f32 %v355, %v325
      %v357 = vadd.f32 %v356, %v328
      %v358 = vadd.f32 %v357, %v333
      %v359 = vadd.f32 %v358, %v336
      %v360 = vadd.f32 %v359, %v341
      %v361 = vadd.f32 %v360, %v344
      %v362 = vrot.slane %v361, 4
      %v363 = vadd.f32 %v361, %v362
      %v364 = vrot.slane %v363, 2
      %v365 = vadd.f32 %v363, %v364
      %v366 = vrot.slane %v365, 1
      %v367 = vadd.f32 %v365, %v366
      %v368 = vmul.f32 %v317, %v317
      %v369 = vmul.f32 %v320, %v320
      %v370 = vmul.f32 %v325, %v325
      %v371 = vmul.f32 %v328, %v328
      %v372 = vmul.f32 %v333, %v333
      %v373 = vmul.f32 %v336, %v336
      %v374 = vmul.f32 %v341, %v341
      %v375 = vmul.f32 %v344, %v344
      %v376 = vadd.f32 %v368, %v369
      %v377 = vadd.f32 %v376, %v370
      %v378 = vadd.f32 %v377, %v371
      %v379 = vadd.f32 %v378, %v372
      %v380 = vadd.f32 %v379, %v373
      %v381 = vadd.f32 %v380, %v374
      %v382 = vadd.f32 %v381, %v375
      %v383 = vrot.slane %v382, 4
      %v384 = vadd.f32 %v382, %v383
      %v385 = vrot.slane %v384, 2
      %v386 = vadd.f32 %v384, %v385
      %v387 = vrot.slane %v386, 1
      %v388 = vadd.f32 %v386, %v387
      %vm389 = vcmask 1040384
      %v390 = vsel %vm389, %v367, %v388
      %391 = vst [vmem:[%s184] sm:$0x3] %v390
      %s392 = smul.u32 8, %s15
      %p393 = scmp.lt.s32.totalorder %s392, 15
      %s394 = scalar_select %p393, %s392, 15
      %s395 = smul.addr %s394, 8
      %s396 = scalar_lea.vmem %s2, %s395
      %p397 = scmp.lt.s32.totalorder %s15, 1
      %s398 = scalar_select %p397, %s15, 1
      %s399 = smul.addr %s398, 2
      %s400 = scalar_lea.vmem %s3, %s399
      // Predicated region
      $region29: #{conv_block_forward.2} parent=27 // pred_check
        %p401 = pneg %p80
      $region30: #{conv_block_forward.2} parent=27 // pred_check_branch
        %403 = sbr.rel (%p401) target = $region32
      $region31: #{conv_block_forward.2} parent=27 // pred_region
        %s404 = smul.u32 8, %s15
      $region32: #{conv_block_forward.2} parent=27 // pred_fallthru
        _
      // Predicated region
      $region33: #{conv_block_forward.2} parent=27 // pred_check
        %p405 = pneg %p106
      $region34: #{conv_block_forward.2} parent=27 // pred_check_branch
        %407 = sbr.rel (%p405) target = $region36
      $region35: #{conv_block_forward.2} parent=27 // pred_region
        _
      $region36: #{conv_block_forward.2} parent=27 // pred_fallthru
        _
    $region28: #{conv_block_forward.2} parent=5 // pred_fallthru
      _
    %p408 = scmp.le.s32.totalorder 2, %s10
    // Predicated region
    $region37: #{conv_block_forward.2} parent=5 // pred_check
      %p409 = pneg %p408
    $region38: #{conv_block_forward.2} parent=5 // pred_check_branch
      %411 = sbr.rel (%p409) target = $region40
    $region39: #{conv_block_forward.2} parent=5 // pred_region
      %s412 = ssub.s32 %s10, 2
      // Predicated region
      $region41: #{conv_block_forward.2} parent=39 // pred_check
        %p413 = pneg %p86
      $region42: #{conv_block_forward.2} parent=39 // pred_check_branch
        %415 = sbr.rel (%p413) target = $region44
      $region43: #{conv_block_forward.2} parent=39 // pred_region
        %s416 = smul.u32 8, %s16
        %p417 = scmp.lt.s32.totalorder %s416, 15
        %s418 = scalar_select %p417, %s416, 15
        %s419 = smul.addr %s418, 8
        %s420 = scalar_lea.vmem %s2, %s419
      $region44: #{conv_block_forward.2} parent=39 // pred_fallthru
        _
      // Predicated region
      $region45: #{conv_block_forward.2} parent=39 // pred_check
        %p421 = pneg %p112
      $region46: #{conv_block_forward.2} parent=39 // pred_check_branch
        %423 = sbr.rel (%p421) target = $region48
      $region47: #{conv_block_forward.2} parent=39 // pred_region
        %p424 = scmp.lt.s32.totalorder %s16, 1
        %s425 = scalar_select %p424, %s16, 1
        %s426 = smul.addr %s425, 2
        %s427 = scalar_lea.vmem %s3, %s426
      $region48: #{conv_block_forward.2} parent=39 // pred_fallthru
        _
    $region40: #{conv_block_forward.2} parent=5 // pred_fallthru
      _
  $region6: #{conv_block_forward.2} parent=0 // loop_footer
    %s14 = sadd.s32 1, %s10
  $region7: #{conv_block_forward.2} parent=0 // loop_footer_branch
    %9 = sbr.rel target = $region3
  $region8: #{conv_block_forward.2} parent=0 // loop_exit
    _

</llo_original>
